<compile_context>
chip_gen: v7x
topology: tpu7x:2x2x1
jax: 0.10.0
libtpu: 0.0.40
codegen_flags: <defaults>
</compile_context>

<pallas_src>
import math

import numpy as np
import jax
import jax.numpy as jnp
from jax import lax
from jax.experimental import pallas as pl
from jax.experimental.pallas import tpu as pltpu

# ----------------------------- model dimensions -----------------------------
N = 8                 # batch of pipeline configs (kernel is generic in N, mult of 8)
IN_DIM = 24           # pipeline / config feature dim
IN_CURVE_DIM = 50     # learning-curve length
OUT_DIM = 32          # GP-input encoding dim
ENC_HIDDEN = 128
ENC_OUT = 32
CURVE_OUT = 16

# fused / padded dims
IN_PAD = 128                              # concat(24 + 50) -> padded to 128 lanes
HID2 = 2 * ENC_HIDDEN                     # 256: block-diag fused hidden width
Z_PAD = 128                               # head output lane-padded 32 -> 128

# slab row offsets (all multiples of 8)
_R_W1 = 0                                 # (128, 256)
_R_W2 = _R_W1 + IN_PAD                    # 128 : (256, 256)
_R_W3 = _R_W2 + HID2                      # 384 : (256, 256) (only cols 0:48 real)
_R_WH = _R_W3 + HID2                      # 640 : (256, 128) (only [0:48, 0:32] real)
_R_B1 = _R_WH + HID2                      # 896
_R_B2 = _R_B1 + 1                         # 897
_R_B3 = _R_B2 + 1                         # 898
_R_BH = _R_B3 + 1                         # 899
SLAB_ROWS = 904                           # pad to multiple of 8
SLAB_COLS = 256

# GP hyperparameters at their gpytorch-default (raw param = 0) values.
_SOFTPLUS0 = math.log(2.0)
CONSTANT_MEAN = 0.0                 # ConstantMean() constant init
LENGTHSCALE = _SOFTPLUS0            # RBFKernel lengthscale = softplus(0)
OUTPUTSCALE = _SOFTPLUS0            # ScaleKernel outputscale = softplus(0)
NOISE = _SOFTPLUS0 + 1e-4           # GaussianLikelihood noise = softplus(0) + lower bound


# ------------------------------- Pallas kernel ------------------------------
def surrogate_kernel(x_ref, slab_ref, covar_ref):
    f32 = jnp.float32

    # static, tile-aligned views into the packed parameter slab
    w1 = slab_ref[_R_W1:_R_W2, :]                     # (128, 256) block-diag layer 1
    w2 = slab_ref[_R_W2:_R_W3, :]                     # (256, 256) block-diag layer 2
    w3 = slab_ref[_R_W3:_R_WH, :]                     # (256, 256) block-diag layer 3 (48 real cols)
    wh = slab_ref[_R_WH:_R_B1, 0:Z_PAD]               # (256, 128) head weight (48x32 real)
    b1 = slab_ref[_R_B1:_R_B1 + 1, :]                 # (1, 256)
    b2 = slab_ref[_R_B2:_R_B2 + 1, :]                 # (1, 256)
    b3 = slab_ref[_R_B3:_R_B3 + 1, :]                 # (1, 256)
    bh = slab_ref[_R_BH:_R_BH + 1, 0:Z_PAD]           # (1, 128)

    # --- fused FeatureEncoder: 4 serially-dependent matmuls ---
    x = x_ref[...]                                                            # (N, 128)
    h = jnp.maximum(jnp.dot(x, w1, preferred_element_type=f32) + b1, 0.0)     # (N, 256)
    h = jnp.maximum(jnp.dot(h, w2, preferred_element_type=f32) + b2, 0.0)     # (N, 256)
    h3 = jnp.dot(h, w3, preferred_element_type=f32) + b3                      # (N, 256), cols 48: == 0
    z = jnp.dot(h3, wh, preferred_element_type=f32) + bh                      # (N, 128), cols 32: == 0

    # --- GP prior: ConstantMean + ScaleKernel(RBFKernel), then likelihood noise ---
    # z's padding columns are exact zeros, so sq/inner are unaffected.
    sq = jnp.sum(z * z, axis=1, keepdims=True)                                # (N, 1)
    inner = lax.dot_general(z, z, (((1,), (1,)), ((), ())),
                            preferred_element_type=f32)                       # (N, N) = z @ z.T
    d2 = jnp.maximum(sq + jnp.transpose(sq) - 2.0 * inner, 0.0)               # pairwise ||zi-zj||^2

    inv_ls2 = 1.0 / (LENGTHSCALE * LENGTHSCALE)
    K = OUTPUTSCALE * jnp.exp(-0.5 * d2 * inv_ls2)                            # Scale * RBF

    n = K.shape[0]
    row = lax.broadcasted_iota(jnp.int32, (n, n), 0)
    col = lax.broadcasted_iota(jnp.int32, (n, n), 1)
    covar_ref[...] = K + jnp.where(row == col, f32(NOISE), f32(0.0))          # likelihood(prior)


# --------------------------------- wrapper ----------------------------------
def surrogate_forward(pipeline, curve, slab):
    """Returns (mean (N,), covariance (N, N)) of likelihood(gp_model(encoder(...)))."""
    n = pipeline.shape[0]

    # host/XLA-side: concat + lane-pad the two inputs into one (N, 128) slab
    x_cat = jnp.concatenate([pipeline, curve], axis=1)
    x_pad = jnp.pad(x_cat, ((0, 0), (0, IN_PAD - (IN_DIM + IN_CURVE_DIM))))

    vmem = pl.BlockSpec(memory_space=pltpu.MemorySpace.VMEM)
    covar = pl.pallas_call(
        surrogate_kernel,
        out_shape=jax.ShapeDtypeStruct((n, n), jnp.float32),
        in_specs=[vmem, vmem],
        out_specs=vmem,
    )(x_pad, slab)

    # constant mean is compile-time known; no need to write it from the kernel
    mean = jnp.full((n,), jnp.float32(CONSTANT_MEAN))
    return mean, covar


surrogate_forward_jit = jax.jit(surrogate_forward)


# --------------------------- deterministic init ------------------------------
def _init_linear(key, fan_in, fan_out):
    """PyTorch-style default Linear init; weight stored as (in, out), bias as (out,)."""
    kw, kb = jax.random.split(key)
    bound = 1.0 / math.sqrt(fan_in)
    w = jax.random.uniform(kw, (fan_in, fan_out), jnp.float32, -bound, bound)
    b = jax.random.uniform(kb, (fan_out,), jnp.float32, -bound, bound)
    return w, b


def make_params(key):
    keys = jax.random.split(key, 7)
    wp1, bp1 = _init_linear(keys[0], IN_DIM, ENC_HIDDEN)
    wp2, bp2 = _init_linear(keys[1], ENC_HIDDEN, ENC_HIDDEN)
    wp3, bp3 = _init_linear(keys[2], ENC_HIDDEN, ENC_OUT)
    wc1, bc1 = _init_linear(keys[3], IN_CURVE_DIM, ENC_HIDDEN)
    wc2, bc2 = _init_linear(keys[4], ENC_HIDDEN, ENC_HIDDEN)
    wc3, bc3 = _init_linear(keys[5], ENC_HIDDEN, CURVE_OUT)
    wh, bh = _init_linear(keys[6], ENC_OUT + CURVE_OUT, OUT_DIM)
    wh_enc, wh_cur = wh[:ENC_OUT, :], wh[ENC_OUT:, :]
    return (wp1, bp1, wp2, bp2, wp3, bp3,
            wc1, bc1, wc2, bc2, wc3, bc3,
            wh_enc, wh_cur, bh)


def pack_params(params):
    """Pack all weights/biases into one pre-padded (904, 256) f32 slab (block-diag MLP)."""
    (wp1, bp1, wp2, bp2, wp3, bp3,
     wc1, bc1, wc2, bc2, wc3, bc3,
     wh_enc, wh_cur, bh) = [np.asarray(p, np.float32) for p in params]

    W = np.zeros((SLAB_ROWS, SLAB_COLS), np.float32)
    # layer 1 (block-diag): config rows 0:24 -> cols 0:128, curve rows 24:74 -> cols 128:256
    W[_R_W1 + 0:_R_W1 + IN_DIM, 0:ENC_HIDDEN] = wp1
    W[_R_W1 + IN_DIM:_R_W1 + IN_DIM + IN_CURVE_DIM, ENC_HIDDEN:HID2] = wc1
    # layer 2 (block-diag)
    W[_R_W2 + 0:_R_W2 + ENC_HIDDEN, 0:ENC_HIDDEN] = wp2
    W[_R_W2 + ENC_HIDDEN:_R_W2 + HID2, ENC_HIDDEN:HID2] = wc2
    # layer 3 (block-diag, 48 real output cols)
    W[_R_W3 + 0:_R_W3 + ENC_HIDDEN, 0:ENC_OUT] = wp3
    W[_R_W3 + ENC_HIDDEN:_R_W3 + HID2, ENC_OUT:ENC_OUT + CURVE_OUT] = wc3
    # head (48 real input rows, 32 real output cols; lane-padded to 128)
    W[_R_WH + 0:_R_WH + ENC_OUT, 0:OUT_DIM] = wh_enc
    W[_R_WH + ENC_OUT:_R_WH + ENC_OUT + CURVE_OUT, 0:OUT_DIM] = wh_cur
    # biases
    W[_R_B1, 0:ENC_HIDDEN] = bp1
    W[_R_B1, ENC_HIDDEN:HID2] = bc1
    W[_R_B2, 0:ENC_HIDDEN] = bp2
    W[_R_B2, ENC_HIDDEN:HID2] = bc2
    W[_R_B3, 0:ENC_OUT] = bp3
    W[_R_B3, ENC_OUT:ENC_OUT + CURVE_OUT] = bc3
    W[_R_BH, 0:OUT_DIM] = bh
    return jnp.asarray(W)


# ------------------------------ pure-JAX reference ---------------------------
def reference_forward(pipeline, curve, params):
    (wp1, bp1, wp2, bp2, wp3, bp3,
     wc1, bc1, wc2, bc2, wc3, bc3,
     wh_enc, wh_cur, bh) = params
    h = jnp.maximum(pipeline @ wp1 + bp1, 0.0)
    h = jnp.maximum(h @ wp2 + bp2, 0.0)
    enc = h @ wp3 + bp3
    g = jnp.maximum(curve @ wc1 + bc1, 0.0)
    g = jnp.maximum(g @ wc2 + bc2, 0.0)
    cur = g @ wc3 + bc3
    z = enc @ wh_enc + cur @ wh_cur + bh
    d2 = jnp.maximum(
        jnp.sum(z * z, 1)[:, None] + jnp.sum(z * z, 1)[None, :] - 2.0 * (z @ z.T), 0.0)
    K = OUTPUTSCALE * jnp.exp(-0.5 * d2 / (LENGTHSCALE * LENGTHSCALE))
    K = K + NOISE * jnp.eye(z.shape[0], dtype=jnp.float32)
    mean = jnp.full((z.shape[0],), CONSTANT_MEAN, jnp.float32)
    return mean, K


# ----------------------------------- main ------------------------------------
if __name__ == "__main__":
    key = jax.random.PRNGKey(0)
    k_pipe, k_curve, k_params = jax.random.split(key, 3)

    pipeline = jax.random.normal(k_pipe, (N, IN_DIM), jnp.float32)
    curve = jax.random.uniform(k_curve, (N, IN_CURVE_DIM), jnp.float32)
    params = make_params(k_params)
    slab = pack_params(params)          # one-time host-side packing of all 15 tensors

    mean, covar = surrogate_forward_jit(pipeline, curve, slab)
    jax.block_until_ready((mean, covar))

    ref_mean, ref_covar = reference_forward(pipeline, curve, params)
    assert jnp.allclose(mean, ref_mean, atol=1e-5), "mean mismatch"
    assert jnp.allclose(covar, ref_covar, rtol=1e-5, atol=1e-5), "covariance mismatch"

    print("KERNEL_OK")
</pallas_src>

<mosaic_0001>
module attributes {stable_mosaic.version = 11 : i64} {
  func.func @surrogate_kernel(%arg0: memref<8x128xf32, #tpu.memory_space<vmem>>, %arg1: memref<904x256xf32, #tpu.memory_space<vmem>>, %arg2: memref<8x8xf32, #tpu.memory_space<vmem>>) attributes {dimension_semantics = [], scalar_prefetch = 0 : i64, scratch_operands = 0 : i64, tpu.core_type = #tpu.core_type<tc>} {
    %c0 = arith.constant 0 : index
    %c0_0 = arith.constant 0 : index
    %0 = vector.load %arg1[%c0, %c0_0] : memref<904x256xf32, #tpu.memory_space<vmem>>, vector<128x256xf32>
    %c128 = arith.constant 128 : index
    %c0_1 = arith.constant 0 : index
    %1 = vector.load %arg1[%c128, %c0_1] : memref<904x256xf32, #tpu.memory_space<vmem>>, vector<256x256xf32>
    %c384 = arith.constant 384 : index
    %c0_2 = arith.constant 0 : index
    %2 = vector.load %arg1[%c384, %c0_2] : memref<904x256xf32, #tpu.memory_space<vmem>>, vector<256x256xf32>
    %c640 = arith.constant 640 : index
    %c0_3 = arith.constant 0 : index
    %3 = vector.load %arg1[%c640, %c0_3] : memref<904x256xf32, #tpu.memory_space<vmem>>, vector<256x128xf32>
    %c896 = arith.constant 896 : index
    %c0_4 = arith.constant 0 : index
    %4 = vector.load %arg1[%c896, %c0_4] : memref<904x256xf32, #tpu.memory_space<vmem>>, vector<1x256xf32>
    %c897 = arith.constant 897 : index
    %c0_5 = arith.constant 0 : index
    %5 = vector.load %arg1[%c897, %c0_5] : memref<904x256xf32, #tpu.memory_space<vmem>>, vector<1x256xf32>
    %c898 = arith.constant 898 : index
    %c0_6 = arith.constant 0 : index
    %6 = vector.load %arg1[%c898, %c0_6] : memref<904x256xf32, #tpu.memory_space<vmem>>, vector<1x256xf32>
    %c899 = arith.constant 899 : index
    %c0_7 = arith.constant 0 : index
    %7 = vector.load %arg1[%c899, %c0_7] : memref<904x256xf32, #tpu.memory_space<vmem>>, vector<1x128xf32>
    %c0_8 = arith.constant 0 : index
    %c0_9 = arith.constant 0 : index
    %8 = vector.load %arg0[%c0_8, %c0_9] : memref<8x128xf32, #tpu.memory_space<vmem>>, vector<8x128xf32>
    %cst = arith.constant dense<0.000000e+00> : vector<8x256xf32>
    %9 = tpu.matmul %8, %0, %cst {dimension_numbers = #tpu.dot_dimension_numbers<[1], [0], [0], [1], [0, 0, 1, 1], [], []>} : vector<8x128xf32>, vector<128x256xf32>, vector<8x256xf32> -> vector<8x256xf32>
    %10 = vector.broadcast %4 : vector<1x256xf32> to vector<8x256xf32>
    %11 = arith.addf %9, %10 : vector<8x256xf32>
    %cst_10 = arith.constant 0.000000e+00 : f32
    %12 = vector.broadcast %cst_10 : f32 to vector<8x256xf32>
    %13 = arith.maximumf %11, %12 : vector<8x256xf32>
    %cst_11 = arith.constant dense<0.000000e+00> : vector<8x256xf32>
    %14 = tpu.matmul %13, %1, %cst_11 {dimension_numbers = #tpu.dot_dimension_numbers<[1], [0], [0], [1], [0, 0, 1, 1], [], []>} : vector<8x256xf32>, vector<256x256xf32>, vector<8x256xf32> -> vector<8x256xf32>
    %15 = vector.broadcast %5 : vector<1x256xf32> to vector<8x256xf32>
    %16 = arith.addf %14, %15 : vector<8x256xf32>
    %cst_12 = arith.constant 0.000000e+00 : f32
    %17 = vector.broadcast %cst_12 : f32 to vector<8x256xf32>
    %18 = arith.maximumf %16, %17 : vector<8x256xf32>
    %cst_13 = arith.constant dense<0.000000e+00> : vector<8x256xf32>
    %19 = tpu.matmul %18, %2, %cst_13 {dimension_numbers = #tpu.dot_dimension_numbers<[1], [0], [0], [1], [0, 0, 1, 1], [], []>} : vector<8x256xf32>, vector<256x256xf32>, vector<8x256xf32> -> vector<8x256xf32>
    %20 = vector.broadcast %6 : vector<1x256xf32> to vector<8x256xf32>
    %21 = arith.addf %19, %20 : vector<8x256xf32>
    %cst_14 = arith.constant dense<0.000000e+00> : vector<8x128xf32>
    %22 = tpu.matmul %21, %3, %cst_14 {dimension_numbers = #tpu.dot_dimension_numbers<[1], [0], [0], [1], [0, 0, 1, 1], [], []>} : vector<8x256xf32>, vector<256x128xf32>, vector<8x128xf32> -> vector<8x128xf32>
    %23 = vector.broadcast %7 : vector<1x128xf32> to vector<8x128xf32>
    %24 = arith.addf %22, %23 : vector<8x128xf32>
    %25 = arith.mulf %24, %24 : vector<8x128xf32>
    %cst_15 = arith.constant dense<0.000000e+00> : vector<8xf32>
    %26 = vector.multi_reduction <add>, %25, %cst_15 [1] : vector<8x128xf32> to vector<8xf32>
    %27 = vector.shape_cast %26 : vector<8xf32> to vector<8x1xf32>
    %cst_16 = arith.constant dense<0.000000e+00> : vector<8x8xf32>
    %28 = tpu.matmul %24, %24, %cst_16 {dimension_numbers = #tpu.dot_dimension_numbers<[1], [1], [0], [0], [0, 0, 1, 0], [], []>} : vector<8x128xf32>, vector<8x128xf32>, vector<8x8xf32> -> vector<8x8xf32>
    %29 = tpu.transpose %27, [1, 0] : vector<8x1xf32> -> vector<1x8xf32>
    %30 = vector.broadcast %27 : vector<8x1xf32> to vector<8x8xf32>
    %31 = vector.broadcast %29 : vector<1x8xf32> to vector<8x8xf32>
    %32 = arith.addf %30, %31 : vector<8x8xf32>
    %cst_17 = arith.constant 2.000000e+00 : f32
    %33 = vector.broadcast %cst_17 : f32 to vector<8x8xf32>
    %34 = arith.mulf %33, %28 : vector<8x8xf32>
    %35 = arith.subf %32, %34 : vector<8x8xf32>
    %cst_18 = arith.constant 0.000000e+00 : f32
    %36 = vector.broadcast %cst_18 : f32 to vector<8x8xf32>
    %37 = arith.maximumf %35, %36 : vector<8x8xf32>
    %cst_19 = arith.constant -5.000000e-01 : f32
    %38 = vector.broadcast %cst_19 : f32 to vector<8x8xf32>
    %39 = arith.mulf %38, %37 : vector<8x8xf32>
    %cst_20 = arith.constant 2.08136892 : f32
    %40 = vector.broadcast %cst_20 : f32 to vector<8x8xf32>
    %41 = arith.mulf %39, %40 : vector<8x8xf32>
    %42 = math.exp %41 : vector<8x8xf32>
    %cst_21 = arith.constant 0.693147182 : f32
    %43 = vector.broadcast %cst_21 : f32 to vector<8x8xf32>
    %44 = arith.mulf %43, %42 : vector<8x8xf32>
    %45 = tpu.iota {dimensions = array<i32: 0>} : vector<8x8xi32>
    %46 = tpu.iota {dimensions = array<i32: 1>} : vector<8x8xi32>
    %47 = arith.cmpi eq, %45, %46 : vector<8x8xi32>
    %cst_22 = arith.constant 0.693247199 : f32
    %cst_23 = arith.constant 0.000000e+00 : f32
    %48 = vector.broadcast %cst_22 : f32 to vector<8x8xf32>
    %49 = vector.broadcast %cst_23 : f32 to vector<8x8xf32>
    %50 = arith.select %47, %48, %49 : vector<8x8xi1>, vector<8x8xf32>
    %51 = arith.addf %44, %50 : vector<8x8xf32>
    %c0_24 = arith.constant 0 : index
    %c0_25 = arith.constant 0 : index
    %52 = vector.load %arg2[%c0_24, %c0_25] : memref<8x8xf32, #tpu.memory_space<vmem>>, vector<8x8xf32>
    tpu.vector_store %arg2[%c0_24, %c0_25], %51 {strides = array<i32>} : memref<8x8xf32, #tpu.memory_space<vmem>>, vector<8x8xf32>,
    return
  }
}

</mosaic_0001>

<llo_original>
// kernel: surrogate_forward.1
$region0: #{surrogate_forward.1}
  #allocation0 [shape = 'u32[]', space=smem, size = 0x4, offset = 0x4, fixed_abs, tag = 'smem constant byte address 0x4 - core index']
  #allocation1 [shape = 'u32[144,128]{1,0:T(1,128)}', space=vmem, size = 0x12000, scoped, tag = 'internal scratch']
  %s0 = inlined_call_operand.vmem [shape: f32[8,128], index: 0, kind: input, shape index: {}]
  %s1 = inlined_call_operand.hbm [shape: f32[904,256], index: 1, kind: input, shape index: {}]
  %s2 = inlined_call_operand.hbm [shape: f32[8,8], index: 2, kind: output, shape index: {}]
  %s3 = sld [smem:[#allocation0]]
  $region22: #{surrogate_forward.1} parent=0
    _
  %s5 = ssub.s32 1, %s3
  %s6 = scalar_select 0, %s5, %s3
  $region1: #{surrogate_forward.1} parent=0
    #allocation2 [shape = 'u8[925696]{0}', space=vmem, size = 0xe2000, scoped, tag = 'input window, operand 1, single buffered']
    #allocation3 [shape = 's32[1]{0}', space=sflag, size = 0x4, scoped, tag = 'scoped memory for surrogate_forward.1']
    #allocation4 [shape = 's32[1]{0}', space=sflag, size = 0x4, scoped, tag = 'scoped memory for surrogate_forward.1']
    #allocation5 [shape = 'u8[4096]{0}', space=vmem, size = 0x1000, scoped, tag = 'output window, operand 0, single buffered']
    %7 = vsyncpa [#allocation3], 0
    %8 = vsyncpa [#allocation4], 0
    // Predicated region
    $region2: #{surrogate_forward.1} parent=1 // pred_check
      _
    $region3: #{surrogate_forward.1} parent=1 // pred_check_branch
      %10 = sbr.rel (0) target = $region5
    $region4: #{surrogate_forward.1} parent=1 // pred_region
      _
    $region5: #{surrogate_forward.1} parent=1 // pred_fallthru
      _
    // Predicated region
    $region6: #{surrogate_forward.1} parent=1 // pred_check
      _
    $region7: #{surrogate_forward.1} parent=1 // pred_check_branch
      %12 = sbr.rel (0) target = $region9
    $region8: #{surrogate_forward.1} parent=1 // pred_region
      %s14 = ssub.s32 28928, 28928
      %15 = vsyncadd [#allocation3], %s14
      %s16 = sshll.u32 [#allocation2], 4
      %s17 = int_to_ptr.vmem [resolvable:$true] %s16
      %22 = dma.hbm_to_vmem [thread:$0]  %s1, 28928, %s17, [#allocation3], 256, 256, 16
    $region9: #{surrogate_forward.1} parent=1 // pred_fallthru
      _
    // Predicated region
    $region10: #{surrogate_forward.1} parent=1 // pred_check
      _
    $region11: #{surrogate_forward.1} parent=1 // pred_check_branch
      %24 = sbr.rel (0) target = $region13
    $region12: #{surrogate_forward.1} parent=1 // pred_region
      %25 = dma.done [#allocation3], 28928
    $region13: #{surrogate_forward.1} parent=1 // pred_fallthru
      _
    %v26 = vld [vmem:[#allocation2] sm:$0xff]
    %v27 = vld [vmem:[#allocation2 + $0x8] sm:$0xff]
    %v28 = vld [vmem:[#allocation2 + $0x10] sm:$0xff]
    %v29 = vld [vmem:[#allocation2 + $0x18] sm:$0xff]
    %v30 = vld [vmem:[#allocation2 + $0x20] sm:$0xff]
    %v31 = vld [vmem:[#allocation2 + $0x28] sm:$0xff]
    %v32 = vld [vmem:[#allocation2 + $0x30] sm:$0xff]
    %v33 = vld [vmem:[#allocation2 + $0x38] sm:$0xff]
    %v34 = vld [vmem:[#allocation2 + $0x40] sm:$0xff]
    %v35 = vld [vmem:[#allocation2 + $0x48] sm:$0xff]
    %v36 = vld [vmem:[#allocation2 + $0x50] sm:$0xff]
    %v37 = vld [vmem:[#allocation2 + $0x58] sm:$0xff]
    %v38 = vld [vmem:[#allocation2 + $0x60] sm:$0xff]
    %v39 = vld [vmem:[#allocation2 + $0x68] sm:$0xff]
    %v40 = vld [vmem:[#allocation2 + $0x70] sm:$0xff]
    %v41 = vld [vmem:[#allocation2 + $0x78] sm:$0xff]
    %v42 = vld [vmem:[#allocation2 + $0x80] sm:$0xff]
    %v43 = vld [vmem:[#allocation2 + $0x88] sm:$0xff]
    %v44 = vld [vmem:[#allocation2 + $0x90] sm:$0xff]
    %v45 = vld [vmem:[#allocation2 + $0x98] sm:$0xff]
    %v46 = vld [vmem:[#allocation2 + $0xa0] sm:$0xff]
    %v47 = vld [vmem:[#allocation2 + $0xa8] sm:$0xff]
    %v48 = vld [vmem:[#allocation2 + $0xb0] sm:$0xff]
    %v49 = vld [vmem:[#allocation2 + $0xb8] sm:$0xff]
    %v50 = vld [vmem:[#allocation2 + $0xc0] sm:$0xff]
    %v51 = vld [vmem:[#allocation2 + $0xc8] sm:$0xff]
    %v52 = vld [vmem:[#allocation2 + $0xd0] sm:$0xff]
    %v53 = vld [vmem:[#allocation2 + $0xd8] sm:$0xff]
    %v54 = vld [vmem:[#allocation2 + $0xe0] sm:$0xff]
    %v55 = vld [vmem:[#allocation2 + $0xe8] sm:$0xff]
    %v56 = vld [vmem:[#allocation2 + $0xf0] sm:$0xff]
    %v57 = vld [vmem:[#allocation2 + $0xf8] sm:$0xff]
    %v58 = vld [vmem:[#allocation2 + $0x100] sm:$0xff]
    %v59 = vld [vmem:[#allocation2 + $0x108] sm:$0xff]
    %v60 = vld [vmem:[#allocation2 + $0x110] sm:$0xff]
    %v61 = vld [vmem:[#allocation2 + $0x118] sm:$0xff]
    %v62 = vld [vmem:[#allocation2 + $0x120] sm:$0xff]
    %v63 = vld [vmem:[#allocation2 + $0x128] sm:$0xff]
    %v64 = vld [vmem:[#allocation2 + $0x130] sm:$0xff]
    %v65 = vld [vmem:[#allocation2 + $0x138] sm:$0xff]
    %v66 = vld [vmem:[#allocation2 + $0x140] sm:$0xff]
    %v67 = vld [vmem:[#allocation2 + $0x148] sm:$0xff]
    %v68 = vld [vmem:[#allocation2 + $0x150] sm:$0xff]
    %v69 = vld [vmem:[#allocation2 + $0x158] sm:$0xff]
    %v70 = vld [vmem:[#allocation2 + $0x160] sm:$0xff]
    %v71 = vld [vmem:[#allocation2 + $0x168] sm:$0xff]
    %v72 = vld [vmem:[#allocation2 + $0x170] sm:$0xff]
    %v73 = vld [vmem:[#allocation2 + $0x178] sm:$0xff]
    %v74 = vld [vmem:[#allocation2 + $0x180] sm:$0xff]
    %v75 = vld [vmem:[#allocation2 + $0x188] sm:$0xff]
    %v76 = vld [vmem:[#allocation2 + $0x190] sm:$0xff]
    %v77 = vld [vmem:[#allocation2 + $0x198] sm:$0xff]
    %v78 = vld [vmem:[#allocation2 + $0x1a0] sm:$0xff]
    %v79 = vld [vmem:[#allocation2 + $0x1a8] sm:$0xff]
    %v80 = vld [vmem:[#allocation2 + $0x1b0] sm:$0xff]
    %v81 = vld [vmem:[#allocation2 + $0x1b8] sm:$0xff]
    %v82 = vld [vmem:[#allocation2 + $0x1c0] sm:$0xff]
    %v83 = vld [vmem:[#allocation2 + $0x1c8] sm:$0xff]
    %v84 = vld [vmem:[#allocation2 + $0x1d0] sm:$0xff]
    %v85 = vld [vmem:[#allocation2 + $0x1d8] sm:$0xff]
    %v86 = vld [vmem:[#allocation2 + $0x1e0] sm:$0xff]
    %v87 = vld [vmem:[#allocation2 + $0x1e8] sm:$0xff]
    %v88 = vld [vmem:[#allocation2 + $0x1f0] sm:$0xff]
    %v89 = vld [vmem:[#allocation2 + $0x1f8] sm:$0xff]
    %v90 = vld [vmem:[#allocation2 + $0x200] sm:$0xff]
    %v91 = vld [vmem:[#allocation2 + $0x208] sm:$0xff]
    %v92 = vld [vmem:[#allocation2 + $0x210] sm:$0xff]
    %v93 = vld [vmem:[#allocation2 + $0x218] sm:$0xff]
    %v94 = vld [vmem:[#allocation2 + $0x220] sm:$0xff]
    %v95 = vld [vmem:[#allocation2 + $0x228] sm:$0xff]
    %v96 = vld [vmem:[#allocation2 + $0x230] sm:$0xff]
    %v97 = vld [vmem:[#allocation2 + $0x238] sm:$0xff]
    %v98 = vld [vmem:[#allocation2 + $0x240] sm:$0xff]
    %v99 = vld [vmem:[#allocation2 + $0x248] sm:$0xff]
    %v100 = vld [vmem:[#allocation2 + $0x250] sm:$0xff]
    %v101 = vld [vmem:[#allocation2 + $0x258] sm:$0xff]
    %v102 = vld [vmem:[#allocation2 + $0x260] sm:$0xff]
    %v103 = vld [vmem:[#allocation2 + $0x268] sm:$0xff]
    %v104 = vld [vmem:[#allocation2 + $0x270] sm:$0xff]
    %v105 = vld [vmem:[#allocation2 + $0x278] sm:$0xff]
    %v106 = vld [vmem:[#allocation2 + $0x280] sm:$0xff]
    %v107 = vld [vmem:[#allocation2 + $0x288] sm:$0xff]
    %v108 = vld [vmem:[#allocation2 + $0x290] sm:$0xff]
    %v109 = vld [vmem:[#allocation2 + $0x298] sm:$0xff]
    %v110 = vld [vmem:[#allocation2 + $0x2a0] sm:$0xff]
    %v111 = vld [vmem:[#allocation2 + $0x2a8] sm:$0xff]
    %v112 = vld [vmem:[#allocation2 + $0x2b0] sm:$0xff]
    %v113 = vld [vmem:[#allocation2 + $0x2b8] sm:$0xff]
    %v114 = vld [vmem:[#allocation2 + $0x2c0] sm:$0xff]
    %v115 = vld [vmem:[#allocation2 + $0x2c8] sm:$0xff]
    %v116 = vld [vmem:[#allocation2 + $0x2d0] sm:$0xff]
    %v117 = vld [vmem:[#allocation2 + $0x2d8] sm:$0xff]
    %v118 = vld [vmem:[#allocation2 + $0x2e0] sm:$0xff]
    %v119 = vld [vmem:[#allocation2 + $0x2e8] sm:$0xff]
    %v120 = vld [vmem:[#allocation2 + $0x2f0] sm:$0xff]
    %v121 = vld [vmem:[#allocation2 + $0x2f8] sm:$0xff]
    %v122 = vld [vmem:[#allocation2 + $0x300] sm:$0xff]
    %v123 = vld [vmem:[#allocation2 + $0x308] sm:$0xff]
    %v124 = vld [vmem:[#allocation2 + $0x310] sm:$0xff]
    %v125 = vld [vmem:[#allocation2 + $0x318] sm:$0xff]
    %v126 = vld [vmem:[#allocation2 + $0x320] sm:$0xff]
    %v127 = vld [vmem:[#allocation2 + $0x328] sm:$0xff]
    %v128 = vld [vmem:[#allocation2 + $0x330] sm:$0xff]
    %v129 = vld [vmem:[#allocation2 + $0x338] sm:$0xff]
    %v130 = vld [vmem:[#allocation2 + $0x340] sm:$0xff]
    %v131 = vld [vmem:[#allocation2 + $0x348] sm:$0xff]
    %v132 = vld [vmem:[#allocation2 + $0x350] sm:$0xff]
    %v133 = vld [vmem:[#allocation2 + $0x358] sm:$0xff]
    %v134 = vld [vmem:[#allocation2 + $0x360] sm:$0xff]
    %v135 = vld [vmem:[#allocation2 + $0x368] sm:$0xff]
    %v136 = vld [vmem:[#allocation2 + $0x370] sm:$0xff]
    %v137 = vld [vmem:[#allocation2 + $0x378] sm:$0xff]
    %v138 = vld [vmem:[#allocation2 + $0x380] sm:$0xff]
    %v139 = vld [vmem:[#allocation2 + $0x388] sm:$0xff]
    %v140 = vld [vmem:[#allocation2 + $0x390] sm:$0xff]
    %v141 = vld [vmem:[#allocation2 + $0x398] sm:$0xff]
    %v142 = vld [vmem:[#allocation2 + $0x3a0] sm:$0xff]
    %v143 = vld [vmem:[#allocation2 + $0x3a8] sm:$0xff]
    %v144 = vld [vmem:[#allocation2 + $0x3b0] sm:$0xff]
    %v145 = vld [vmem:[#allocation2 + $0x3b8] sm:$0xff]
    %v146 = vld [vmem:[#allocation2 + $0x3c0] sm:$0xff]
    %v147 = vld [vmem:[#allocation2 + $0x3c8] sm:$0xff]
    %v148 = vld [vmem:[#allocation2 + $0x3d0] sm:$0xff]
    %v149 = vld [vmem:[#allocation2 + $0x3d8] sm:$0xff]
    %v150 = vld [vmem:[#allocation2 + $0x3e0] sm:$0xff]
    %v151 = vld [vmem:[#allocation2 + $0x3e8] sm:$0xff]
    %v152 = vld [vmem:[#allocation2 + $0x3f0] sm:$0xff]
    %v153 = vld [vmem:[#allocation2 + $0x3f8] sm:$0xff]
    %v154 = vld [vmem:[#allocation2 + $0x400] sm:$0xff]
    %v155 = vld [vmem:[#allocation2 + $0x408] sm:$0xff]
    %v156 = vld [vmem:[#allocation2 + $0x410] sm:$0xff]
    %v157 = vld [vmem:[#allocation2 + $0x418] sm:$0xff]
    %v158 = vld [vmem:[#allocation2 + $0x420] sm:$0xff]
    %v159 = vld [vmem:[#allocation2 + $0x428] sm:$0xff]
    %v160 = vld [vmem:[#allocation2 + $0x430] sm:$0xff]
    %v161 = vld [vmem:[#allocation2 + $0x438] sm:$0xff]
    %v162 = vld [vmem:[#allocation2 + $0x440] sm:$0xff]
    %v163 = vld [vmem:[#allocation2 + $0x448] sm:$0xff]
    %v164 = vld [vmem:[#allocation2 + $0x450] sm:$0xff]
    %v165 = vld [vmem:[#allocation2 + $0x458] sm:$0xff]
    %v166 = vld [vmem:[#allocation2 + $0x460] sm:$0xff]
    %v167 = vld [vmem:[#allocation2 + $0x468] sm:$0xff]
    %v168 = vld [vmem:[#allocation2 + $0x470] sm:$0xff]
    %v169 = vld [vmem:[#allocation2 + $0x478] sm:$0xff]
    %v170 = vld [vmem:[#allocation2 + $0x480] sm:$0xff]
    %v171 = vld [vmem:[#allocation2 + $0x488] sm:$0xff]
    %v172 = vld [vmem:[#allocation2 + $0x490] sm:$0xff]
    %v173 = vld [vmem:[#allocation2 + $0x498] sm:$0xff]
    %v174 = vld [vmem:[#allocation2 + $0x4a0] sm:$0xff]
    %v175 = vld [vmem:[#allocation2 + $0x4a8] sm:$0xff]
    %v176 = vld [vmem:[#allocation2 + $0x4b0] sm:$0xff]
    %v177 = vld [vmem:[#allocation2 + $0x4b8] sm:$0xff]
    %v178 = vld [vmem:[#allocation2 + $0x4c0] sm:$0xff]
    %v179 = vld [vmem:[#allocation2 + $0x4c8] sm:$0xff]
    %v180 = vld [vmem:[#allocation2 + $0x4d0] sm:$0xff]
    %v181 = vld [vmem:[#allocation2 + $0x4d8] sm:$0xff]
    %v182 = vld [vmem:[#allocation2 + $0x4e0] sm:$0xff]
    %v183 = vld [vmem:[#allocation2 + $0x4e8] sm:$0xff]
    %v184 = vld [vmem:[#allocation2 + $0x4f0] sm:$0xff]
    %v185 = vld [vmem:[#allocation2 + $0x4f8] sm:$0xff]
    %v186 = vld [vmem:[#allocation2 + $0x500] sm:$0xff]
    %v187 = vld [vmem:[#allocation2 + $0x510] sm:$0xff]
    %v188 = vld [vmem:[#allocation2 + $0x520] sm:$0xff]
    %v189 = vld [vmem:[#allocation2 + $0x530] sm:$0xff]
    %v190 = vld [vmem:[#allocation2 + $0x540] sm:$0xff]
    %v191 = vld [vmem:[#allocation2 + $0x550] sm:$0xff]
    %v192 = vld [vmem:[#allocation2 + $0x560] sm:$0xff]
    %v193 = vld [vmem:[#allocation2 + $0x570] sm:$0xff]
    %v194 = vld [vmem:[#allocation2 + $0x580] sm:$0xff]
    %v195 = vld [vmem:[#allocation2 + $0x590] sm:$0xff]
    %v196 = vld [vmem:[#allocation2 + $0x5a0] sm:$0xff]
    %v197 = vld [vmem:[#allocation2 + $0x5b0] sm:$0xff]
    %v198 = vld [vmem:[#allocation2 + $0x5c0] sm:$0xff]
    %v199 = vld [vmem:[#allocation2 + $0x5d0] sm:$0xff]
    %v200 = vld [vmem:[#allocation2 + $0x5e0] sm:$0xff]
    %v201 = vld [vmem:[#allocation2 + $0x5f0] sm:$0xff]
    %v202 = vld [vmem:[#allocation2 + $0x600] sm:$0xff]
    %v203 = vld [vmem:[#allocation2 + $0x610] sm:$0xff]
    %v204 = vld [vmem:[#allocation2 + $0x620] sm:$0xff]
    %v205 = vld [vmem:[#allocation2 + $0x630] sm:$0xff]
    %v206 = vld [vmem:[#allocation2 + $0x640] sm:$0xff]
    %v207 = vld [vmem:[#allocation2 + $0x650] sm:$0xff]
    %v208 = vld [vmem:[#allocation2 + $0x660] sm:$0xff]
    %v209 = vld [vmem:[#allocation2 + $0x670] sm:$0xff]
    %v210 = vld [vmem:[#allocation2 + $0x680] sm:$0xff]
    %v211 = vld [vmem:[#allocation2 + $0x690] sm:$0xff]
    %v212 = vld [vmem:[#allocation2 + $0x6a0] sm:$0xff]
    %v213 = vld [vmem:[#allocation2 + $0x6b0] sm:$0xff]
    %v214 = vld [vmem:[#allocation2 + $0x6c0] sm:$0xff]
    %v215 = vld [vmem:[#allocation2 + $0x6d0] sm:$0xff]
    %v216 = vld [vmem:[#allocation2 + $0x6e0] sm:$0xff]
    %v217 = vld [vmem:[#allocation2 + $0x6f0] sm:$0xff]
    %s218 = scalar_lea.vmem [#allocation2], 1792
    %v219 = vld [vmem:[%s218] ss:$8 sm:$0x3]
    %s220 = scalar_lea.vmem [#allocation2], 1793
    %v221 = vld [vmem:[%s220] ss:$8 sm:$0x3]
    %s222 = scalar_lea.vmem [#allocation2], 1794
    %v223 = vld [vmem:[%s222] ss:$8 sm:$0x3]
    %v224 = vld [vmem:[#allocation2 + $0x703] ss:$0 sm:$0xff]
    %v225 = vld [vmem:[%s0] sm:$0xff]
    %v227 = vlaneseq
    %v228 = vshrl.u32 %v227, 7
    %v229 = vsub.s32 0, %v228
    %v230 = vrot.slane %v219, %v229
    %v231 = vlaneseq
    %v232 = vshrl.u32 %v231, 7
    %v233 = vsub.s32 1, %v232
    %v234 = vrot.slane %v219, %v233
    %237 = vmatprep.subr.mxu0 %v27
    %238 = vmatpush1.msra.mxu0 %v26
    %239 = vmatprep.subr.mxu0 %v29
    %240 = vmatpush1.msra.mxu0 %v28
    %241 = vmatprep.subr.mxu0 %v31
    %242 = vmatpush1.msra.mxu0 %v30
    %243 = vmatprep.subr.mxu0 %v33
    %244 = vmatpush1.msra.mxu0 %v32
    %245 = vmatprep.subr.mxu0 %v35
    %246 = vmatpush1.msra.mxu0 %v34
    %247 = vmatprep.subr.mxu0 %v37
    %248 = vmatpush1.msra.mxu0 %v36
    %249 = vmatprep.subr.mxu0 %v39
    %250 = vmatpush1.msra.mxu0 %v38
    %251 = vmatprep.subr.mxu0 %v41
    %252 = vmatpush1.msra.mxu0 %v40
    %253 = vmatprep.subr.mxu0 %v43
    %254 = vmatpush1.msra.mxu0 %v42
    %255 = vmatprep.subr.mxu0 %v45
    %256 = vmatpush1.msra.mxu0 %v44
    %257 = vmatprep.subr.mxu0 %v47
    %258 = vmatpush1.msra.mxu0 %v46
    %259 = vmatprep.subr.mxu0 %v49
    %260 = vmatpush1.msra.mxu0 %v48
    %261 = vmatprep.subr.mxu0 %v51
    %262 = vmatpush1.msra.mxu0 %v50
    %263 = vmatprep.subr.mxu0 %v53
    %264 = vmatpush1.msra.mxu0 %v52
    %265 = vmatprep.subr.mxu0 %v55
    %266 = vmatpush1.msra.mxu0 %v54
    %267 = vmatprep.subr.mxu0 %v57
    %268 = vmatpush1.msra.mxu0 %v56
    %269 = vmatprep.subr.mxu0 0.0
    %270 = vmatpush1.msra.mxu0 0.0
    %271 = vmatprep.subr.mxu0 0.0
    %272 = vmatpush1.msra.mxu0 0.0
    %273 = vmatprep.subr.mxu0 0.0
    %274 = vmatpush1.msra.mxu0 0.0
    %275 = vmatprep.subr.mxu0 0.0
    %276 = vmatpush1.msra.mxu0 0.0
    %277 = vmatprep.subr.mxu0 0.0
    %278 = vmatpush1.msra.mxu0 0.0
    %279 = vmatprep.subr.mxu0 0.0
    %280 = vmatpush1.msra.mxu0 0.0
    %281 = vmatprep.subr.mxu0 0.0
    %282 = vmatpush1.msra.mxu0 0.0
    %283 = vmatprep.subr.mxu0 0.0
    %284 = vmatpush1.msra.mxu0 0.0
    %285 = vmatprep.subr.mxu0 0.0
    %286 = vmatpush1.msra.mxu0 0.0
    %287 = vmatprep.subr.mxu0 0.0
    %288 = vmatpush1.msra.mxu0 0.0
    %289 = vmatprep.subr.mxu0 0.0
    %290 = vmatpush1.msra.mxu0 0.0
    %291 = vmatprep.subr.mxu0 0.0
    %292 = vmatpush1.msra.mxu0 0.0
    %293 = vmatprep.subr.mxu0 0.0
    %294 = vmatpush1.msra.mxu0 0.0
    %295 = vmatprep.subr.mxu0 0.0
    %296 = vmatpush1.msra.mxu0 0.0
    %297 = vmatprep.subr.mxu0 0.0
    %298 = vmatpush1.msra.mxu0 0.0
    %299 = vmatprep.subr.mxu0 0.0
    %300 = vmatpush1.msra.mxu0 0.0
    %301 = vmatprep.mubr.f32.mxu0 0.0
    %302 = vmatmul.mubr.f32.gmra.mrb[0].mxu0 %v225
    %v303 = vpop.f32.mrb[0].mxu0
    %v304 = vadd.f32 %v230, %v303
    %v305 = vpop.f32.mrb[0].mxu0
    %v306 = vadd.f32 %v234, %v305
    %307 = vdwg.mxu0
    %v308 = vmax.f32 %v304, 0.0
    %v309 = vmax.f32 %v306, 0.0
    %v311 = vlaneseq
    %v312 = vshrl.u32 %v311, 7
    %v313 = vsub.s32 0, %v312
    %v314 = vrot.slane %v221, %v313
    %v315 = vlaneseq
    %v316 = vshrl.u32 %v315, 7
    %v317 = vsub.s32 1, %v316
    %v318 = vrot.slane %v221, %v317
    %321 = vmatprep.subr.mxu0 %v59
    %322 = vmatpush1.msra.mxu0 %v58
    %323 = vmatprep.subr.mxu0 %v61
    %324 = vmatpush1.msra.mxu0 %v60
    %325 = vmatprep.subr.mxu0 %v63
    %326 = vmatpush1.msra.mxu0 %v62
    %327 = vmatprep.subr.mxu0 %v65
    %328 = vmatpush1.msra.mxu0 %v64
    %329 = vmatprep.subr.mxu0 %v67
    %330 = vmatpush1.msra.mxu0 %v66
    %331 = vmatprep.subr.mxu0 %v69
    %332 = vmatpush1.msra.mxu0 %v68
    %333 = vmatprep.subr.mxu0 %v71
    %334 = vmatpush1.msra.mxu0 %v70
    %335 = vmatprep.subr.mxu0 %v73
    %336 = vmatpush1.msra.mxu0 %v72
    %337 = vmatprep.subr.mxu0 %v75
    %338 = vmatpush1.msra.mxu0 %v74
    %339 = vmatprep.subr.mxu0 %v77
    %340 = vmatpush1.msra.mxu0 %v76
    %341 = vmatprep.subr.mxu0 %v79
    %342 = vmatpush1.msra.mxu0 %v78
    %343 = vmatprep.subr.mxu0 %v81
    %344 = vmatpush1.msra.mxu0 %v80
    %345 = vmatprep.subr.mxu0 %v83
    %346 = vmatpush1.msra.mxu0 %v82
    %347 = vmatprep.subr.mxu0 %v85
    %348 = vmatpush1.msra.mxu0 %v84
    %349 = vmatprep.subr.mxu0 %v87
    %350 = vmatpush1.msra.mxu0 %v86
    %351 = vmatprep.subr.mxu0 %v89
    %352 = vmatpush1.msra.mxu0 %v88
    %353 = vmatprep.subr.mxu0 %v91
    %354 = vmatpush1.msra.mxu0 %v90
    %355 = vmatprep.subr.mxu0 %v93
    %356 = vmatpush1.msra.mxu0 %v92
    %357 = vmatprep.subr.mxu0 %v95
    %358 = vmatpush1.msra.mxu0 %v94
    %359 = vmatprep.subr.mxu0 %v97
    %360 = vmatpush1.msra.mxu0 %v96
    %361 = vmatprep.subr.mxu0 %v99
    %362 = vmatpush1.msra.mxu0 %v98
    %363 = vmatprep.subr.mxu0 %v101
    %364 = vmatpush1.msra.mxu0 %v100
    %365 = vmatprep.subr.mxu0 %v103
    %366 = vmatpush1.msra.mxu0 %v102
    %367 = vmatprep.subr.mxu0 %v105
    %368 = vmatpush1.msra.mxu0 %v104
    %369 = vmatprep.subr.mxu0 %v107
    %370 = vmatpush1.msra.mxu0 %v106
    %371 = vmatprep.subr.mxu0 %v109
    %372 = vmatpush1.msra.mxu0 %v108
    %373 = vmatprep.subr.mxu0 %v111
    %374 = vmatpush1.msra.mxu0 %v110
    %375 = vmatprep.subr.mxu0 %v113
    %376 = vmatpush1.msra.mxu0 %v112
    %377 = vmatprep.subr.mxu0 %v115
    %378 = vmatpush1.msra.mxu0 %v114
    %379 = vmatprep.subr.mxu0 %v117
    %380 = vmatpush1.msra.mxu0 %v116
    %381 = vmatprep.subr.mxu0 %v119
    %382 = vmatpush1.msra.mxu0 %v118
    %383 = vmatprep.subr.mxu0 %v121
    %384 = vmatpush1.msra.mxu0 %v120
    %385 = vmatprep.mubr.f32.mxu0 %v309
    %386 = vmatmul.mubr.f32.gmra.mrb[0].mxu0 %v308
    %v387 = vpop.f32.mrb[0].mxu0
    %v388 = vadd.f32 %v314, %v387
    %v389 = vpop.f32.mrb[0].mxu0
    %v390 = vadd.f32 %v318, %v389
    %391 = vdwg.mxu0
    %v392 = vmax.f32 %v388, 0.0
    %v393 = vmax.f32 %v390, 0.0
    %v395 = vlaneseq
    %v396 = vshrl.u32 %v395, 7
    %v397 = vsub.s32 0, %v396
    %v398 = vrot.slane %v223, %v397
    %v399 = vlaneseq
    %v400 = vshrl.u32 %v399, 7
    %v401 = vsub.s32 1, %v400
    %v402 = vrot.slane %v223, %v401
    %405 = vmatprep.subr.mxu0 %v123
    %406 = vmatpush1.msra.mxu0 %v122
    %407 = vmatprep.subr.mxu0 %v125
    %408 = vmatpush1.msra.mxu0 %v124
    %409 = vmatprep.subr.mxu0 %v127
    %410 = vmatpush1.msra.mxu0 %v126
    %411 = vmatprep.subr.mxu0 %v129
    %412 = vmatpush1.msra.mxu0 %v128
    %413 = vmatprep.subr.mxu0 %v131
    %414 = vmatpush1.msra.mxu0 %v130
    %415 = vmatprep.subr.mxu0 %v133
    %416 = vmatpush1.msra.mxu0 %v132
    %417 = vmatprep.subr.mxu0 %v135
    %418 = vmatpush1.msra.mxu0 %v134
    %419 = vmatprep.subr.mxu0 %v137
    %420 = vmatpush1.msra.mxu0 %v136
    %421 = vmatprep.subr.mxu0 %v139
    %422 = vmatpush1.msra.mxu0 %v138
    %423 = vmatprep.subr.mxu0 %v141
    %424 = vmatpush1.msra.mxu0 %v140
    %425 = vmatprep.subr.mxu0 %v143
    %426 = vmatpush1.msra.mxu0 %v142
    %427 = vmatprep.subr.mxu0 %v145
    %428 = vmatpush1.msra.mxu0 %v144
    %429 = vmatprep.subr.mxu0 %v147
    %430 = vmatpush1.msra.mxu0 %v146
    %431 = vmatprep.subr.mxu0 %v149
    %432 = vmatpush1.msra.mxu0 %v148
    %433 = vmatprep.subr.mxu0 %v151
    %434 = vmatpush1.msra.mxu0 %v150
    %435 = vmatprep.subr.mxu0 %v153
    %436 = vmatpush1.msra.mxu0 %v152
    %437 = vmatprep.subr.mxu0 %v155
    %438 = vmatpush1.msra.mxu0 %v154
    %439 = vmatprep.subr.mxu0 %v157
    %440 = vmatpush1.msra.mxu0 %v156
    %441 = vmatprep.subr.mxu0 %v159
    %442 = vmatpush1.msra.mxu0 %v158
    %443 = vmatprep.subr.mxu0 %v161
    %444 = vmatpush1.msra.mxu0 %v160
    %445 = vmatprep.subr.mxu0 %v163
    %446 = vmatpush1.msra.mxu0 %v162
    %447 = vmatprep.subr.mxu0 %v165
    %448 = vmatpush1.msra.mxu0 %v164
    %449 = vmatprep.subr.mxu0 %v167
    %450 = vmatpush1.msra.mxu0 %v166
    %451 = vmatprep.subr.mxu0 %v169
    %452 = vmatpush1.msra.mxu0 %v168
    %453 = vmatprep.subr.mxu0 %v171
    %454 = vmatpush1.msra.mxu0 %v170
    %455 = vmatprep.subr.mxu0 %v173
    %456 = vmatpush1.msra.mxu0 %v172
    %457 = vmatprep.subr.mxu0 %v175
    %458 = vmatpush1.msra.mxu0 %v174
    %459 = vmatprep.subr.mxu0 %v177
    %460 = vmatpush1.msra.mxu0 %v176
    %461 = vmatprep.subr.mxu0 %v179
    %462 = vmatpush1.msra.mxu0 %v178
    %463 = vmatprep.subr.mxu0 %v181
    %464 = vmatpush1.msra.mxu0 %v180
    %465 = vmatprep.subr.mxu0 %v183
    %466 = vmatpush1.msra.mxu0 %v182
    %467 = vmatprep.subr.mxu0 %v185
    %468 = vmatpush1.msra.mxu0 %v184
    %469 = vmatprep.mubr.f32.mxu0 %v393
    %470 = vmatmul.mubr.f32.gmra.mrb[0].mxu0 %v392
    %v471 = vpop.f32.mrb[0].mxu0
    %v472 = vadd.f32 %v398, %v471
    %v473 = vpop.f32.mrb[0].mxu0
    %v474 = vadd.f32 %v402, %v473
    %475 = vdwg.mxu0
    %476 = vmatprep.subr.mxu0 0.0
    %477 = vmatpush1.msra.mxu0 %v186
    %478 = vmatprep.subr.mxu0 0.0
    %479 = vmatpush1.msra.mxu0 %v187
    %480 = vmatprep.subr.mxu0 0.0
    %481 = vmatpush1.msra.mxu0 %v188
    %482 = vmatprep.subr.mxu0 0.0
    %483 = vmatpush1.msra.mxu0 %v189
    %484 = vmatprep.subr.mxu0 0.0
    %485 = vmatpush1.msra.mxu0 %v190
    %486 = vmatprep.subr.mxu0 0.0
    %487 = vmatpush1.msra.mxu0 %v191
    %488 = vmatprep.subr.mxu0 0.0
    %489 = vmatpush1.msra.mxu0 %v192
    %490 = vmatprep.subr.mxu0 0.0
    %491 = vmatpush1.msra.mxu0 %v193
    %492 = vmatprep.subr.mxu0 0.0
    %493 = vmatpush1.msra.mxu0 %v194
    %494 = vmatprep.subr.mxu0 0.0
    %495 = vmatpush1.msra.mxu0 %v195
    %496 = vmatprep.subr.mxu0 0.0
    %497 = vmatpush1.msra.mxu0 %v196
    %498 = vmatprep.subr.mxu0 0.0
    %499 = vmatpush1.msra.mxu0 %v197
    %500 = vmatprep.subr.mxu0 0.0
    %501 = vmatpush1.msra.mxu0 %v198
    %502 = vmatprep.subr.mxu0 0.0
    %503 = vmatpush1.msra.mxu0 %v199
    %504 = vmatprep.subr.mxu0 0.0
    %505 = vmatpush1.msra.mxu0 %v200
    %506 = vmatprep.subr.mxu0 0.0
    %507 = vmatpush1.msra.mxu0 %v201
    %508 = vmatprep.subr.mxu0 0.0
    %509 = vmatpush1.msra.mxu0 %v202
    %510 = vmatprep.subr.mxu0 0.0
    %511 = vmatpush1.msra.mxu0 %v203
    %512 = vmatprep.subr.mxu0 0.0
    %513 = vmatpush1.msra.mxu0 %v204
    %514 = vmatprep.subr.mxu0 0.0
    %515 = vmatpush1.msra.mxu0 %v205
    %516 = vmatprep.subr.mxu0 0.0
    %517 = vmatpush1.msra.mxu0 %v206
    %518 = vmatprep.subr.mxu0 0.0
    %519 = vmatpush1.msra.mxu0 %v207
    %520 = vmatprep.subr.mxu0 0.0
    %521 = vmatpush1.msra.mxu0 %v208
    %522 = vmatprep.subr.mxu0 0.0
    %523 = vmatpush1.msra.mxu0 %v209
    %524 = vmatprep.subr.mxu0 0.0
    %525 = vmatpush1.msra.mxu0 %v210
    %526 = vmatprep.subr.mxu0 0.0
    %527 = vmatpush1.msra.mxu0 %v211
    %528 = vmatprep.subr.mxu0 0.0
    %529 = vmatpush1.msra.mxu0 %v212
    %530 = vmatprep.subr.mxu0 0.0
    %531 = vmatpush1.msra.mxu0 %v213
    %532 = vmatprep.subr.mxu0 0.0
    %533 = vmatpush1.msra.mxu0 %v214
    %534 = vmatprep.subr.mxu0 0.0
    %535 = vmatpush1.msra.mxu0 %v215
    %536 = vmatprep.subr.mxu0 0.0
    %537 = vmatpush1.msra.mxu0 %v216
    %538 = vmatprep.subr.mxu0 0.0
    %539 = vmatpush1.msra.mxu0 %v217
    %540 = vmatprep.mubr.f32.mxu0 %v474
    %541 = vmatmul.mubr.f32.gmra.mrb[0].mxu0 %v472
    %v542 = vpop.f32.mrb[0].mxu0
    %v543 = vadd.f32 %v224, %v542
    %v544 = vpop.f32.mrb[0].mxu0
    %545 = vdwg.mxu0
    %v546 = vmul.f32 %v543, %v543
    %547 = vadd.xlane.f32.xlu0 %v546
    %v548 = vpop.xlane.xlu0 %547
    %549 = vmatprep.subr.mxu0 0.0
    %550 = vmatpush1.xpose.msra.mxu0 %v543
    %551 = vmatprep.subr.mxu0 0.0
    %552 = vmatpush1.xpose.msra.mxu0 0.0
    %553 = vmatprep.subr.mxu0 0.0
    %554 = vmatpush1.xpose.msra.mxu0 0.0
    %555 = vmatprep.subr.mxu0 0.0
    %556 = vmatpush1.xpose.msra.mxu0 0.0
    %557 = vmatprep.subr.mxu0 0.0
    %558 = vmatpush1.xpose.msra.mxu0 0.0
    %559 = vmatprep.subr.mxu0 0.0
    %560 = vmatpush1.xpose.msra.mxu0 0.0
    %561 = vmatprep.subr.mxu0 0.0
    %562 = vmatpush1.xpose.msra.mxu0 0.0
    %563 = vmatprep.subr.mxu0 0.0
    %564 = vmatpush1.xpose.msra.mxu0 0.0
    %565 = vmatprep.subr.mxu0 0.0
    %566 = vmatpush1.xpose.msra.mxu0 0.0
    %567 = vmatprep.subr.mxu0 0.0
    %568 = vmatpush1.xpose.msra.mxu0 0.0
    %569 = vmatprep.subr.mxu0 0.0
    %570 = vmatpush1.xpose.msra.mxu0 0.0
    %571 = vmatprep.subr.mxu0 0.0
    %572 = vmatpush1.xpose.msra.mxu0 0.0
    %573 = vmatprep.subr.mxu0 0.0
    %574 = vmatpush1.xpose.msra.mxu0 0.0
    %575 = vmatprep.subr.mxu0 0.0
    %576 = vmatpush1.xpose.msra.mxu0 0.0
    %577 = vmatprep.subr.mxu0 0.0
    %578 = vmatpush1.xpose.msra.mxu0 0.0
    %579 = vmatprep.subr.mxu0 0.0
    %580 = vmatpush1.xpose.msra.mxu0 0.0
    %581 = vmatprep.subr.mxu0 0.0
    %582 = vmatpush1.xpose.msra.mxu0 0.0
    %583 = vmatprep.subr.mxu0 0.0
    %584 = vmatpush1.xpose.msra.mxu0 0.0
    %585 = vmatprep.subr.mxu0 0.0
    %586 = vmatpush1.xpose.msra.mxu0 0.0
    %587 = vmatprep.subr.mxu0 0.0
    %588 = vmatpush1.xpose.msra.mxu0 0.0
    %589 = vmatprep.subr.mxu0 0.0
    %590 = vmatpush1.xpose.msra.mxu0 0.0
    %591 = vmatprep.subr.mxu0 0.0
    %592 = vmatpush1.xpose.msra.mxu0 0.0
    %593 = vmatprep.subr.mxu0 0.0
    %594 = vmatpush1.xpose.msra.mxu0 0.0
    %595 = vmatprep.subr.mxu0 0.0
    %596 = vmatpush1.xpose.msra.mxu0 0.0
    %597 = vmatprep.subr.mxu0 0.0
    %598 = vmatpush1.xpose.msra.mxu0 0.0
    %599 = vmatprep.subr.mxu0 0.0
    %600 = vmatpush1.xpose.msra.mxu0 0.0
    %601 = vmatprep.subr.mxu0 0.0
    %602 = vmatpush1.xpose.msra.mxu0 0.0
    %603 = vmatprep.subr.mxu0 0.0
    %604 = vmatpush1.xpose.msra.mxu0 0.0
    %605 = vmatprep.subr.mxu0 0.0
    %606 = vmatpush1.xpose.msra.mxu0 0.0
    %607 = vmatprep.subr.mxu0 0.0
    %608 = vmatpush1.xpose.msra.mxu0 0.0
    %609 = vmatprep.subr.mxu0 0.0
    %610 = vmatpush1.xpose.msra.mxu0 0.0
    %611 = vmatprep.subr.mxu0 0.0
    %612 = vmatpush1.xpose.msra.mxu0 0.0
    %613 = vmatprep.mubr.f32.mxu0 0.0
    %614 = vmatmul.mubr.f32.gmra.mrb[0].mxu0 %v543
    %v615 = vpop.f32.mrb[0].mxu0
    %v616 = vadd.f32 0.0, %v615
    %v617 = vpop.f32.mrb[0].mxu0
    %618 = vdwg.mxu0
    %619 = vxpose.xlu0.b32.start [1/16] %v548, 128
    %620 = vxpose.xlu0.b32.cont [2/16] 0.0, 128
    %621 = vxpose.xlu0.b32.cont [3/16] 0.0, 128
    %622 = vxpose.xlu0.b32.cont [4/16] 0.0, 128
    %623 = vxpose.xlu0.b32.cont [5/16] 0.0, 128
    %624 = vxpose.xlu0.b32.cont [6/16] 0.0, 128
    %625 = vxpose.xlu0.b32.cont [7/16] 0.0, 128
    %626 = vxpose.xlu0.b32.cont [8/16] 0.0, 128
    %627 = vxpose.xlu0.b32.cont [9/16] 0.0, 128
    %628 = vxpose.xlu0.b32.cont [10/16] 0.0, 128
    %629 = vxpose.xlu0.b32.cont [11/16] 0.0, 128
    %630 = vxpose.xlu0.b32.cont [12/16] 0.0, 128
    %631 = vxpose.xlu0.b32.cont [13/16] 0.0, 128
    %632 = vxpose.xlu0.b32.cont [14/16] 0.0, 128
    %633 = vxpose.xlu0.b32.cont [15/16] 0.0, 128
    %634 = vxpose.xlu0.b32.end [16/16] 0.0, 128
    %v635 = vpop.trf.xlu0
    %v636 = vpop.trf.xlu0
    %v637 = vpop.trf.xlu0
    %v638 = vpop.trf.xlu0
    %v639 = vpop.trf.xlu0
    %v640 = vpop.trf.xlu0
    %v641 = vpop.trf.xlu0
    %v642 = vpop.trf.xlu0
    %v643 = vpop.trf.xlu0
    %v644 = vpop.trf.xlu0
    %v645 = vpop.trf.xlu0
    %v646 = vpop.trf.xlu0
    %v647 = vpop.trf.xlu0
    %v648 = vpop.trf.xlu0
    %v649 = vpop.trf.xlu0
    %v650 = vpop.trf.xlu0
    %v651 = vlaneseq
    %v652 = vshrl.u32 %v651, 7
    %v653 = vsub.s32 0, %v652
    %v654 = vrot.slane %v635, %v653
    %v655 = vadd.f32 %v548, %v654
    %v656 = vmul.f32 %v616, 2.0
    %v657 = vsub.f32 %v655, %v656
    %v658 = vmax.f32 %v657, 0.0
    %v659 = vmul.f32 %v658, -0.5
    %v660 = vmul.f32 %v659, 2.081369
    %v661 = vmul.f32 %v660, 1.442695
    %v662 = vpow.pop %v661
    %v663 = vmul.f32 %v662, 0.6931472
    %v664 = vlaneseq
    %v665 = vshrl.u32 %v664, 7
    %v666 = vlaneseq
    %v667 = vand.u32 %v666, 127
    %vm668 = vcmp.eq.s32.totalorder %v665, %v667
    %v669 = vsel %vm668, 0.6932472, 0.0
    %v670 = vadd.f32 %v663, %v669
    %vm671 = vcmask 64512
    %672 = vst.msk [vmem:[#allocation5] sm:$0xff] %vm671, %v670
    // Predicated region
    $region14: #{surrogate_forward.1} parent=1 // pred_check
      _
    $region15: #{surrogate_forward.1} parent=1 // pred_check_branch
      %674 = sbr.rel (0) target = $region17
    $region16: #{surrogate_forward.1} parent=1 // pred_region
      %s676 = ssub.s32 128, 128
      %677 = vsyncadd [#allocation4], %s676
      %s679 = sshll.u32 [#allocation5], 4
      %s680 = int_to_ptr.vmem [resolvable:$true] %s679
      %682 = dma.vmem_to_hbm [thread:$0]  %s680, 128, %s2, [#allocation4]
    $region17: #{surrogate_forward.1} parent=1 // pred_fallthru
      _
    // Predicated region
    $region18: #{surrogate_forward.1} parent=1 // pred_check
      _
    $region19: #{surrogate_forward.1} parent=1 // pred_check_branch
      %684 = sbr.rel (0) target = $region21
    $region20: #{surrogate_forward.1} parent=1 // pred_region
      %685 = dma.done [#allocation4], 128
    $region21: #{surrogate_forward.1} parent=1 // pred_fallthru
      _
    %686 = vsyncpa [#allocation3], 1
    %687 = vsyncpa [#allocation4], 1

</llo_original>
